<compile_context>
chip_gen: v5e
topology: v5e:2x2
jax: 0.10.0
libtpu: 0.0.40
codegen_flags: <defaults>
</compile_context>

<pallas_src>
import functools

import jax
import jax.numpy as jnp
from jax.experimental import pallas as pl
from jax.experimental.pallas import tpu as pltpu

_MIB = 1024 * 1024


def _round_up(v: int, m: int) -> int:
    return -(-v // m) * m


def _head_kernel(x_ref, w_ref, b_ref, o_ref, acc_ref, *, inv_hw: float):
    """One (batch-tile, class-tile, channel-chunk) grid step.

    x_ref:   (TB, TC, HW)  activation tile (lane axis = H*W)
    w_ref:   (TC, TK)      fused classifier weight tile (transposed, lane-padded)
    b_ref:   (1, TK)       fused classifier bias tile
    o_ref:   (TB, TK)      logits tile
    acc_ref: (TB, TK) f32  partial-logits accumulator (persists over the C axis)
    """
    c = pl.program_id(2)

    @pl.when(c == 0)
    def _init():
        acc_ref[...] = jnp.zeros_like(acc_ref)

    # Global average pool over the spatial (lane) axis as a widening reduction:
    # no tile-sized f32 temporary is materialized for low-precision inputs.
    pooled = jnp.sum(x_ref[...], axis=-1, dtype=jnp.float32) * inv_hw      # (TB, TC)
    acc_ref[...] += jnp.dot(pooled, w_ref[...],
                            preferred_element_type=jnp.float32)            # MXU

    @pl.when(c == pl.num_programs(2) - 1)
    def _finalize():
        o_ref[...] = (acc_ref[...] + b_ref[...].astype(jnp.float32)).astype(o_ref.dtype)


def dynamic_simple_head_forward(x, weights, biases=None, *,
                                out_dtype=jnp.float32,
                                weight_dtype=jnp.float32,
                                batch_tile=None, k_tile=None, channel_tile=None,
                                vmem_budget_bytes=None):
    """Fused AdaptiveAvgPool2d(1) + concatenated-Linear classifier head.

    x:       [N, C, H, W] activations
    weights: list of [K_i, C] arrays (torch nn.Linear layout), or a single [K, C]
    biases:  list of [K_i] arrays (entries may be None), or None
    Returns  [N, sum(K_i)] logits in `out_dtype` (f32 by default, matching the
             fp32 torch head even for bf16 activations).

    `weight_dtype=jnp.bfloat16` halves the resident fused-weight footprint (useful
    for very large class counts, esp. on 64 MiB-VMEM v7x); accumulation stays f32
    but results may differ from the fp32 torch head in the last bits.
    """
    # TODO(synk): arbitrary pool/neck modules are not translated; this implements
    # the default AdaptiveAvgPool2d(1) + Identity path of DynamicSimpleHead.
    # TODO(synk): for feature maps whose H*W is small / not a multiple of 128
    # (7x7, 14x14), the lane axis is under-occupied and the cross-lane reduce can
    # become XLU-bound; a channels-last view or MXU ones-vector pooling would fix
    # that but is not implemented here.
    if not isinstance(weights, (list, tuple)):
        weights = [weights]
    if biases is None:
        biases = [None] * len(weights)

    N, C, H, W = x.shape
    HW = H * W

    # cat of per-classifier Linears == one Linear with concatenated params.
    w_list = [jnp.asarray(w, jnp.float32) for w in weights]
    K = int(sum(int(w.shape[0]) for w in w_list))
    b_list = [jnp.zeros((int(w.shape[0]),), jnp.float32) if b is None
              else jnp.asarray(b, jnp.float32)
              for w, b in zip(w_list, biases)]
    w_cat = jnp.concatenate(w_list, axis=0)            # [K, C]
    b_cat = jnp.concatenate(b_list, axis=0)            # [K]

    # Lane-dense activation view (no data movement): last dim = H*W.
    x3 = x.reshape(N, C, HW)
    xsz = x3.dtype.itemsize
    wsz = jnp.dtype(weight_dtype).itemsize
    osz = jnp.dtype(out_dtype).itemsize

    # VMEM capacity / budget (leave headroom for compiler-internal scratch).
    try:
        vmem_cap = int(pltpu.get_tpu_info().vmem_capacity_bytes)
    except Exception:
        vmem_cap = 64 * _MIB                            # conservative (v7x per-TC size)
    if vmem_budget_bytes is None:
        vmem_budget_bytes = min(int(vmem_cap * 0.75), vmem_cap - 8 * _MIB)
    vmem_budget_bytes = max(int(vmem_budget_bytes), 8 * _MIB)

    # --- class tile TK: multiple of 128 (unmasked lane stores); cap each resident
    # weight buffer at ~4 MiB so very large heads are K-tiled instead of blowing VMEM.
    K128 = max(128, _round_up(K, 128))
    if k_tile is not None:
        TK = max(128, (int(k_tile) // 128) * 128)
    else:
        TK = max(128, ((4 * _MIB) // max(1, C * wsz)) // 128 * 128)
    TK = min(TK, K128)
    Kp = _round_up(K128, TK)                            # padded class dim, exact multiple of TK
    nk = Kp // TK

    # Fused, padded classifier parameters (padding columns are zero, sliced off below).
    w_p = jnp.zeros((C, Kp), jnp.float32).at[:, :K].set(w_cat.T).astype(weight_dtype)
    b_p = jnp.zeros((1, Kp), jnp.float32).at[:, :K].set(b_cat[None, :])

    # Working-set model: x / weight / out / bias double-buffered by the pipeline,
    # plus the f32 accumulator scratch and slack.
    def _fits(tb, tc):
        need = (2 * tb * tc * HW * xsz + 2 * tc * TK * wsz + 2 * tb * TK * osz
                + 2 * TK * 4 + tb * TK * 4 + 2 * _MIB)
        return need <= vmem_budget_bytes

    # --- batch tile TB: largest multiple of 8 that fits (per x buffer also capped at
    # 16 MiB; beyond that, pipeline-overhead amortization gains are negligible). ---
    row_bytes = C * HW * xsz
    if batch_tile is not None:
        TB = max(1, min(int(batch_tile), N))
    else:
        avail = vmem_budget_bytes - (2 * C * TK * wsz + 2 * TK * 4 + 2 * _MIB)
        per_row = 2 * row_bytes + 2 * TK * osz + TK * 4
        tb_budget = avail // per_row if avail > 0 else 0
        TB = min(N, 1024, max(0, tb_budget), max(0, (16 * _MIB) // row_bytes))
        if TB < 1:
            TB = min(N, 8)                              # one row too big: chunk C below
    if TB < N:
        TB = max(8, (TB // 8) * 8)                      # sublane-aligned blocks
        TB = min(TB, N)
        if N % TB != 0:                                 # prefer a nearby TB dividing N
            for t in range(TB - 8, max(7, (3 * TB) // 4 - 1), -8):
                if N % t == 0:
                    TB = t
                    break
    nb = pl.cdiv(N, TB)

    # --- channel chunk TC: full C by default.  Chunk (multiple of 8 dividing C) only
    # when the slab does not fit, or when there is a single batch tile and the slab is
    # big enough that chunking restores DMA/compute overlap.
    if channel_tile is not None:
        ct = int(channel_tile)
        TC = ct if (ct == C or (0 < ct < C and C % ct == 0 and ct % 8 == 0)) else C
    else:
        TC = C
        if (not _fits(TB, C)) or (nb == 1 and TB * row_bytes > 8 * _MIB):
            for d in range(C - 1, 0, -1):
                if d % 8 == 0 and C % d == 0 and _fits(TB, d) \
                        and TB * d * HW * xsz <= 8 * _MIB:
                    TC = d
                    break
    nc = pl.cdiv(C, TC)

    vmem_needed = (2 * TB * TC * HW * xsz + 2 * TC * TK * wsz + 2 * TB * TK * osz
                   + 2 * TK * 4 + TB * TK * 4)
    vmem_limit = int(min(vmem_cap, max(vmem_needed + 4 * _MIB, 16 * _MIB)))

    kernel = functools.partial(_head_kernel, inv_hw=1.0 / float(HW))

    out = pl.pallas_call(
        kernel,
        out_shape=jax.ShapeDtypeStruct((N, Kp), out_dtype),
        grid=(nb, nk, nc),                                           # reduction (C) axis last
        in_specs=[
            pl.BlockSpec((TB, TC, HW), lambda i, j, c: (i, c, 0)),   # activations (streamed)
            pl.BlockSpec((TC, TK), lambda i, j, c: (c, j)),          # fused weight
            pl.BlockSpec((1, TK), lambda i, j, c: (0, j)),           # fused bias
        ],
        out_specs=pl.BlockSpec((TB, TK), lambda i, j, c: (i, j)),
        scratch_shapes=[pltpu.VMEM((TB, TK), jnp.float32)],          # logits accumulator
        compiler_params=pltpu.CompilerParams(
            dimension_semantics=("parallel", "parallel", "arbitrary"),
            vmem_limit_bytes=vmem_limit,
        ),
    )(x3, w_p, b_p)

    # Strip the lane padding of the class dimension (no batch padding was added).
    return out[:, :K]


if __name__ == "__main__":
    key = jax.random.PRNGKey(0)
    kx, kw1, kw2, kb1, kb2, kx2 = jax.random.split(key, 6)

    N, C, H, W = 2, 32, 16, 16          # batch=2, num_features=32, spatial=16x16
    k1, k2 = 6, 4                       # two appended classifiers (Dynamic head)

    x = jax.random.normal(kx, (N, C, H, W), dtype=jnp.float32)
    # nn.Linear weights (scaled up from the 0.001 init so the matmul contribution is
    # well above the test tolerance); non-zero biases to exercise the fused bias add.
    w1 = 0.01 * jax.random.normal(kw1, (k1, C), dtype=jnp.float32)
    w2 = 0.01 * jax.random.normal(kw2, (k2, C), dtype=jnp.float32)
    b1 = 0.05 * jax.random.normal(kb1, (k1,), dtype=jnp.float32)
    b2 = 0.05 * jax.random.normal(kb2, (k2,), dtype=jnp.float32)

    def ref_head(xs):
        pooled = jnp.mean(xs, axis=(2, 3))                           # [N, C]
        return jnp.concatenate([pooled @ w1.T + b1, pooled @ w2.T + b2], axis=1)

    # 1) Default auto-tiled path (single batch tile, full C, single class tile).
    out = jax.block_until_ready(dynamic_simple_head_forward(x, [w1, w2], [b1, b2]))
    ref = ref_head(x)
    assert out.shape == (N, k1 + k2), out.shape
    assert jnp.allclose(out, ref, atol=1e-4, rtol=1e-3), float(jnp.max(jnp.abs(out - ref)))

    # 2) Channel-chunked accumulation path (C split over the "arbitrary" grid axis).
    out2 = jax.block_until_ready(
        dynamic_simple_head_forward(x, [w1, w2], [b1, b2], channel_tile=16))
    assert jnp.allclose(out2, ref, atol=1e-4, rtol=1e-3), float(jnp.max(jnp.abs(out2 - ref)))

    # 3) Batch-tiled path with a partial final block (no host-side padding copy).
    N2 = 18
    x_big = jax.random.normal(kx2, (N2, C, H, W), dtype=jnp.float32)
    out3 = jax.block_until_ready(
        dynamic_simple_head_forward(x_big, [w1, w2], [b1, b2], batch_tile=8))
    ref3 = ref_head(x_big)
    assert out3.shape == (N2, k1 + k2), out3.shape
    assert jnp.allclose(out3, ref3, atol=1e-4, rtol=1e-3), float(jnp.max(jnp.abs(out3 - ref3)))

    print("KERNEL_OK")
</pallas_src>

<mosaic_0001>
module attributes {stable_mosaic.version = 11 : i64} {
  func.func @_head_kernel(%arg0: i32, %arg1: i32, %arg2: i32, %arg3: memref<2x32x256xf32, #tpu.memory_space<vmem>>, %arg4: memref<32x128xf32, #tpu.memory_space<vmem>>, %arg5: memref<1x128xf32, #tpu.memory_space<vmem>>, %arg6: memref<2x128xf32, #tpu.memory_space<vmem>>, %arg7: memref<2x128xf32, #tpu.memory_space<vmem>>) attributes {dimension_semantics = [#tpu.dimension_semantics<parallel>, #tpu.dimension_semantics<parallel>, #tpu.dimension_semantics<arbitrary>], iteration_bounds = array<i64: 1, 1, 1>, scalar_prefetch = 0 : i64, scratch_operands = 1 : i64, tpu.core_type = #tpu.core_type<tc>, window_params = [{transform_indices = @transform_0, window_bounds = array<i64: 2, 32, 256>}, {transform_indices = @transform_1, window_bounds = array<i64: 32, 128>}, {transform_indices = @transform_2, window_bounds = array<i64: 1, 128>}, {transform_indices = @transform_3, window_bounds = array<i64: 2, 128>}]} {
    %c0_i32 = arith.constant 0 : i32
    %0 = arith.cmpi eq, %arg2, %c0_i32 : i32
    %1 = arith.extui %0 : i1 to i32
    %c0_i32_0 = arith.constant 0 : i32
    %2 = arith.cmpi ne, %1, %c0_i32_0 : i32
    scf.if %2 {
      %cst_13 = arith.constant 0.000000e+00 : f32
      %15 = vector.broadcast %cst_13 : f32 to vector<2x128xf32>
      %c0_14 = arith.constant 0 : index
      %c0_15 = arith.constant 0 : index
      %16 = vector.load %arg7[%c0_14, %c0_15] : memref<2x128xf32, #tpu.memory_space<vmem>>, vector<2x128xf32>
      tpu.vector_store %arg7[%c0_14, %c0_15], %15 {strides = array<i32>} : memref<2x128xf32, #tpu.memory_space<vmem>>, vector<2x128xf32>,
    } else {
    }
    %c0 = arith.constant 0 : index
    %c0_1 = arith.constant 0 : index
    %c0_2 = arith.constant 0 : index
    %3 = vector.load %arg3[%c0, %c0_1, %c0_2] : memref<2x32x256xf32, #tpu.memory_space<vmem>>, vector<2x32x256xf32>
    %cst = arith.constant dense<0.000000e+00> : vector<2x32xf32>
    %4 = vector.multi_reduction <add>, %3, %cst [2] : vector<2x32x256xf32> to vector<2x32xf32>
    %cst_3 = arith.constant 3.906250e-03 : f32
    %5 = vector.broadcast %cst_3 : f32 to vector<2x32xf32>
    %6 = arith.mulf %4, %5 : vector<2x32xf32>
    %c0_4 = arith.constant 0 : index
    %c0_5 = arith.constant 0 : index
    %7 = vector.load %arg7[%c0_4, %c0_5] : memref<2x128xf32, #tpu.memory_space<vmem>>, vector<2x128xf32>
    %c0_6 = arith.constant 0 : index
    %c0_7 = arith.constant 0 : index
    %8 = vector.load %arg4[%c0_6, %c0_7] : memref<32x128xf32, #tpu.memory_space<vmem>>, vector<32x128xf32>
    %cst_8 = arith.constant dense<0.000000e+00> : vector<2x128xf32>
    %9 = tpu.matmul %6, %8, %cst_8 {dimension_numbers = #tpu.dot_dimension_numbers<[1], [0], [0], [1], [0, 0, 1, 1], [], []>} : vector<2x32xf32>, vector<32x128xf32>, vector<2x128xf32> -> vector<2x128xf32>
    %10 = arith.addf %7, %9 : vector<2x128xf32>
    %c0_9 = arith.constant 0 : index
    %c0_10 = arith.constant 0 : index
    %11 = vector.load %arg7[%c0_9, %c0_10] : memref<2x128xf32, #tpu.memory_space<vmem>>, vector<2x128xf32>
    tpu.vector_store %arg7[%c0_9, %c0_10], %10 {strides = array<i32>} : memref<2x128xf32, #tpu.memory_space<vmem>>, vector<2x128xf32>,
    %c0_i32_11 = arith.constant 0 : i32
    %12 = arith.cmpi eq, %arg2, %c0_i32_11 : i32
    %13 = arith.extui %12 : i1 to i32
    %c0_i32_12 = arith.constant 0 : i32
    %14 = arith.cmpi ne, %13, %c0_i32_12 : i32
    scf.if %14 {
      %c0_13 = arith.constant 0 : index
      %c0_14 = arith.constant 0 : index
      %15 = vector.load %arg7[%c0_13, %c0_14] : memref<2x128xf32, #tpu.memory_space<vmem>>, vector<2x128xf32>
      %c0_15 = arith.constant 0 : index
      %c0_16 = arith.constant 0 : index
      %16 = vector.load %arg5[%c0_15, %c0_16] : memref<1x128xf32, #tpu.memory_space<vmem>>, vector<1x128xf32>
      %17 = vector.broadcast %16 : vector<1x128xf32> to vector<2x128xf32>
      %18 = arith.addf %15, %17 : vector<2x128xf32>
      %c0_17 = arith.constant 0 : index
      %c0_18 = arith.constant 0 : index
      %19 = vector.load %arg6[%c0_17, %c0_18] : memref<2x128xf32, #tpu.memory_space<vmem>>, vector<2x128xf32>
      tpu.vector_store %arg6[%c0_17, %c0_18], %18 {strides = array<i32>} : memref<2x128xf32, #tpu.memory_space<vmem>>, vector<2x128xf32>,
    } else {
    }
    return
  }
  func.func @transform_0(%arg0: i32, %arg1: i32, %arg2: i32) -> (i32, i32, i32) {
    %c0_i32 = arith.constant 0 : i32
    %c0_i32_0 = arith.constant 0 : i32
    return %arg0, %arg2, %c0_i32 : i32, i32, i32
  }
  func.func @transform_1(%arg0: i32, %arg1: i32, %arg2: i32) -> (i32, i32) {
    %c0_i32 = arith.constant 0 : i32
    return %arg2, %arg1 : i32, i32
  }
  func.func @transform_2(%arg0: i32, %arg1: i32, %arg2: i32) -> (i32, i32) {
    %c0_i32 = arith.constant 0 : i32
    %c0_i32_0 = arith.constant 0 : i32
    return %c0_i32, %arg1 : i32, i32
  }
  func.func @transform_3(%arg0: i32, %arg1: i32, %arg2: i32) -> (i32, i32) {
    %c0_i32 = arith.constant 0 : i32
    return %arg0, %arg1 : i32, i32
  }
}

</mosaic_0001>

<llo_original>
// kernel: tpu_custom_call.1
$region0: #{tpu_custom_call.1}
  #allocation0 [shape = 'u32[]', space=smem, size = 0x4, offset = 0x4, fixed_abs, tag = 'smem constant byte address 0x4 - core index']
  #allocation1 [shape = 'u32[72,128]{1,0:T(1,128)}', space=vmem, size = 0x9000, scoped, tag = 'internal scratch']
  #allocation2 [shape = 'f32[2,128]{1,0:T(2,128)}', space=vmem, size = 0x400, scoped, tag = 'scratch operand']
  %s0 = inlined_call_operand.hbm [shape: f32[2,32,256], index: 0, kind: input, shape index: {}]
  %s1 = inlined_call_operand.hbm [shape: f32[32,128], index: 1, kind: input, shape index: {}]
  %s2 = inlined_call_operand.vmem [shape: f32[1,128], index: 2, kind: input, shape index: {}]
  %s3 = inlined_call_operand.hbm [shape: f32[2,128], index: 3, kind: output, shape index: {}]
  %s4 = sld [smem:[#allocation0]]
  $region38: #{tpu_custom_call.1} parent=0
    _
  %s6 = ssub.s32 1, %s4
  %s7 = scalar_select 0, %s6, %s4
  $region1: #{tpu_custom_call.1} parent=0
    #allocation3 [shape = 'u8[65536]{0}', space=vmem, size = 0x10000, scoped, tag = 'input window, operand 0, single buffered']
    #allocation4 [shape = 's32[1]{0}', space=sflag, size = 0x4, scoped, tag = 'scoped memory for tpu_custom_call.1']
    #allocation5 [shape = 's32[1]{0}', space=sflag, size = 0x4, scoped, tag = 'scoped memory for tpu_custom_call.1']
    #allocation6 [shape = 'u8[16384]{0}', space=vmem, size = 0x4000, scoped, tag = 'input window, operand 1, single buffered']
    #allocation7 [shape = 's32[1]{0}', space=sflag, size = 0x4, scoped, tag = 'scoped memory for tpu_custom_call.1']
    #allocation8 [shape = 'u8[1024]{0}', space=vmem, size = 0x400, scoped, tag = 'output window, operand 0, single buffered']
    %8 = vsyncpa [#allocation4], 0
    %9 = vsyncpa [#allocation7], 0
    %10 = vsyncpa [#allocation5], 0
    // Predicated region
    $region2: #{tpu_custom_call.1} parent=1 // pred_check
      _
    $region3: #{tpu_custom_call.1} parent=1 // pred_check_branch
      %12 = sbr.rel (0) target = $region5
    $region4: #{tpu_custom_call.1} parent=1 // pred_region
      %14 = vsyncadd [#allocation4], 0
      %s15 = sshll.u32 %s0, 4
      %s16 = int_to_ptr.hbm [resolvable:$true] %s15
      %s17 = sshll.u32 [#allocation3], 4
      %s18 = int_to_ptr.vmem [resolvable:$true] %s17
      %23 = dma.hbm_to_vmem [thread:$0]  %s16, 2048, %s18, [#allocation4], 256, 256, 16
    $region5: #{tpu_custom_call.1} parent=1 // pred_fallthru
      _
    // Predicated region
    $region6: #{tpu_custom_call.1} parent=1 // pred_check
      _
    $region7: #{tpu_custom_call.1} parent=1 // pred_check_branch
      %25 = sbr.rel (0) target = $region9
    $region8: #{tpu_custom_call.1} parent=1 // pred_region
      %27 = vsyncadd [#allocation7], 0
      %s28 = sshll.u32 %s1, 4
      %s29 = int_to_ptr.hbm [resolvable:$true] %s28
      %s30 = sshll.u32 [#allocation6], 4
      %s31 = int_to_ptr.vmem [resolvable:$true] %s30
      %36 = dma.hbm_to_vmem [thread:$0]  %s29, 512, %s31, [#allocation7], 128, 128, 8
    $region9: #{tpu_custom_call.1} parent=1 // pred_fallthru
      _
    // Predicated region
    $region10: #{tpu_custom_call.1} parent=1 // pred_check
      _
    $region11: #{tpu_custom_call.1} parent=1 // pred_check_branch
      %38 = sbr.rel (0) target = $region13
    $region12: #{tpu_custom_call.1} parent=1 // pred_region
      _
    $region13: #{tpu_custom_call.1} parent=1 // pred_fallthru
      _
    // Predicated region
    $region14: #{tpu_custom_call.1} parent=1 // pred_check
      _
    $region15: #{tpu_custom_call.1} parent=1 // pred_check_branch
      %40 = sbr.rel (0) target = $region17
    $region16: #{tpu_custom_call.1} parent=1 // pred_region
      %42 = dma.done [#allocation4], 2048
    $region17: #{tpu_custom_call.1} parent=1 // pred_fallthru
      _
    // Predicated region
    $region18: #{tpu_custom_call.1} parent=1 // pred_check
      _
    $region19: #{tpu_custom_call.1} parent=1 // pred_check_branch
      %44 = sbr.rel (0) target = $region21
    $region20: #{tpu_custom_call.1} parent=1 // pred_region
      %46 = dma.done [#allocation7], 512
    $region21: #{tpu_custom_call.1} parent=1 // pred_fallthru
      _
    %p47 = scmp.eq.s32.totalorder 0, 0
    // Predicated region
    $region22: #{tpu_custom_call.1} parent=1 // pred_check
      %p48 = pneg %p47
    $region23: #{tpu_custom_call.1} parent=1 // pred_check_branch
      %50 = sbr.rel (%p48) target = $region25
    $region24: #{tpu_custom_call.1} parent=1 // pred_region
      %51 = vst [vmem:[#allocation2] sm:$0x3] 0.0
    $region25: #{tpu_custom_call.1} parent=1 // pred_fallthru
      _
    %v52 = vld [vmem:[#allocation3] sm:$0xff]
    %v53 = vld [vmem:[#allocation3 + $0x8] sm:$0xff]
    %v54 = vld [vmem:[#allocation3 + $0x10] sm:$0xff]
    %v55 = vld [vmem:[#allocation3 + $0x18] sm:$0xff]
    %v56 = vld [vmem:[#allocation3 + $0x20] sm:$0xff]
    %v57 = vld [vmem:[#allocation3 + $0x28] sm:$0xff]
    %v58 = vld [vmem:[#allocation3 + $0x30] sm:$0xff]
    %v59 = vld [vmem:[#allocation3 + $0x38] sm:$0xff]
    %v60 = vld [vmem:[#allocation3 + $0x40] sm:$0xff]
    %v61 = vld [vmem:[#allocation3 + $0x48] sm:$0xff]
    %v62 = vld [vmem:[#allocation3 + $0x50] sm:$0xff]
    %v63 = vld [vmem:[#allocation3 + $0x58] sm:$0xff]
    %v64 = vld [vmem:[#allocation3 + $0x60] sm:$0xff]
    %v65 = vld [vmem:[#allocation3 + $0x68] sm:$0xff]
    %v66 = vld [vmem:[#allocation3 + $0x70] sm:$0xff]
    %v67 = vld [vmem:[#allocation3 + $0x78] sm:$0xff]
    %v68 = vadd.f32 %v52, %v53
    %69 = vadd.xlane.f32.xlu0 %v68
    %v70 = vpop.xlane.xlu0 %69
    %v71 = vadd.f32 %v54, %v55
    %72 = vadd.xlane.f32.xlu0 %v71
    %v73 = vpop.xlane.xlu0 %72
    %v74 = vadd.f32 %v56, %v57
    %75 = vadd.xlane.f32.xlu0 %v74
    %v76 = vpop.xlane.xlu0 %75
    %v77 = vadd.f32 %v58, %v59
    %78 = vadd.xlane.f32.xlu0 %v77
    %v79 = vpop.xlane.xlu0 %78
    %v80 = vadd.f32 %v60, %v61
    %81 = vadd.xlane.f32.xlu0 %v80
    %v82 = vpop.xlane.xlu0 %81
    %v83 = vadd.f32 %v62, %v63
    %84 = vadd.xlane.f32.xlu0 %v83
    %v85 = vpop.xlane.xlu0 %84
    %v86 = vadd.f32 %v64, %v65
    %87 = vadd.xlane.f32.xlu0 %v86
    %v88 = vpop.xlane.xlu0 %87
    %v89 = vadd.f32 %v66, %v67
    %90 = vadd.xlane.f32.xlu0 %v89
    %v91 = vpop.xlane.xlu0 %90
    %v92 = vmul.f32 %v70, 0.00390625
    %v93 = vmul.f32 %v73, 0.00390625
    %v94 = vmul.f32 %v76, 0.00390625
    %v95 = vmul.f32 %v79, 0.00390625
    %v96 = vmul.f32 %v82, 0.00390625
    %v97 = vmul.f32 %v85, 0.00390625
    %v98 = vmul.f32 %v88, 0.00390625
    %v99 = vmul.f32 %v91, 0.00390625
    %v100 = vld [vmem:[#allocation2] sm:$0x3]
    %v101 = vld [vmem:[#allocation6] sm:$0xff]
    %v102 = vld [vmem:[#allocation6 + $0x8] sm:$0xff]
    %v103 = vld [vmem:[#allocation6 + $0x10] sm:$0xff]
    %v104 = vld [vmem:[#allocation6 + $0x18] sm:$0xff]
    %v113 = vlaneseq
    %v114 = vand.u32 %v113, 127
    %v115 = vperm.slane %v92, %v114
    %v116 = vadd.s32 %v114, 4294967288
    %v117 = vperm.slane %v93, %v116
    %vm118 = vcmask 130112
    %v119 = vsel %vm118, %v117, %v115
    %v120 = vadd.s32 %v114, 4294967280
    %v121 = vperm.slane %v94, %v120
    %vm122 = vcmask 195712
    %v123 = vsel %vm122, %v121, %v119
    %v124 = vadd.s32 %v114, 4294967272
    %v125 = vperm.slane %v95, %v124
    %vm126 = vcmask 261312
    %v127 = vsel %vm126, %v125, %v123
    %v128 = vperm.slane %v96, %v114
    %v129 = vperm.slane %v97, %v116
    %v130 = vsel %vm118, %v129, %v128
    %v131 = vperm.slane %v98, %v120
    %v132 = vsel %vm122, %v131, %v130
    %v133 = vperm.slane %v99, %v124
    %v134 = vsel %vm126, %v133, %v132
    %vm135 = vcmask 1041409
    %v136 = vsel %vm135, %v134, %v127
    %vm137 = vcmask 261120
    %v138 = vsel %vm137, %v136, 0
    %140 = vmatpush.msra.mxu0 0.0
    %141 = vmatpush.msra.mxu0 0.0
    %142 = vmatpush.msra.mxu0 0.0
    %143 = vmatpush.msra.mxu0 0.0
    %144 = vmatpush.msra.mxu0 0.0
    %145 = vmatpush.msra.mxu0 0.0
    %146 = vmatpush.msra.mxu0 0.0
    %147 = vmatpush.msra.mxu0 0.0
    %148 = vmatpush.msra.mxu0 0.0
    %149 = vmatpush.msra.mxu0 0.0
    %150 = vmatpush.msra.mxu0 0.0
    %151 = vmatpush.msra.mxu0 0.0
    %152 = vmatpush.msra.mxu0 %v104
    %153 = vmatpush.msra.mxu0 %v103
    %154 = vmatpush.msra.mxu0 %v102
    %155 = vmatpush.msra.mxu0 %v101
    %156 = vmatmul.f32.gmra.mxu0 %v138
    %v157 = vpop.f32.mrf.mxu0
    %v158 = vadd.f32 0.0, %v157
    %159 = vdwg.mxu0
    %v160 = vadd.f32 %v100, %v158
    %161 = vst [vmem:[#allocation2] sm:$0x3] %v160
    // Predicated region
    $region26: #{tpu_custom_call.1} parent=1 // pred_check
      %p162 = pneg %p47
    $region27: #{tpu_custom_call.1} parent=1 // pred_check_branch
      %164 = sbr.rel (%p162) target = $region29
    $region28: #{tpu_custom_call.1} parent=1 // pred_region
      %v165 = vld [vmem:[#allocation2] sm:$0x3]
      %v166 = vld [vmem:[%s2] sm:$0x1]
      %v168 = vperm.slane %v166, 0
      %v170 = vadd.f32 %v165, %v168
      %171 = vst [vmem:[#allocation8] sm:$0x3] %v170
    $region29: #{tpu_custom_call.1} parent=1 // pred_fallthru
      _
    // Predicated region
    $region30: #{tpu_custom_call.1} parent=1 // pred_check
      _
    $region31: #{tpu_custom_call.1} parent=1 // pred_check_branch
      %173 = sbr.rel (0) target = $region33
    $region32: #{tpu_custom_call.1} parent=1 // pred_region
      %175 = vsyncadd [#allocation5], 0
      %s177 = sshll.u32 [#allocation8], 4
      %s178 = int_to_ptr.vmem [resolvable:$true] %s177
      %s179 = sshll.u32 %s3, 4
      %s180 = int_to_ptr.hbm [resolvable:$true] %s179
      %182 = dma.vmem_to_hbm [thread:$0]  %s178, 32, %s180, [#allocation5]
    $region33: #{tpu_custom_call.1} parent=1 // pred_fallthru
      _
    // Predicated region
    $region34: #{tpu_custom_call.1} parent=1 // pred_check
      _
    $region35: #{tpu_custom_call.1} parent=1 // pred_check_branch
      %184 = sbr.rel (0) target = $region37
    $region36: #{tpu_custom_call.1} parent=1 // pred_region
      %186 = dma.done [#allocation5], 32
    $region37: #{tpu_custom_call.1} parent=1 // pred_fallthru
      _
    %187 = vsyncpa [#allocation4], 1
    %188 = vsyncpa [#allocation7], 1
    %189 = vsyncpa [#allocation5], 1

</llo_original>
